<compile_context>
chip_gen: v5e
topology: v5e:2x2
jax: 0.10.0
libtpu: 0.0.40
codegen_flags: <defaults>
</compile_context>

<pallas_src>
import math
from functools import partial

import jax
import jax.numpy as jnp
from jax import lax
from jax.experimental import pallas as pl
from jax.experimental.pallas import tpu as pltpu

MASK_SELF_VALUE = -100.0
MASK_KEY_VALUE = -1e30  # safe "minus huge" (exp() underflows to exactly 0, no -inf risk)


# ----------------------------------------------------------------------------
# VMEM sizing helpers (v7x = 64 MiB, v5e/v6e = 128 MiB)
# ----------------------------------------------------------------------------
def _round_up(v, m):
    return ((v + m - 1) // m) * m


def _vmem_capacity_bytes():
    try:
        info = pltpu.get_tpu_info()
        cap = getattr(info, "vmem_capacity_bytes", None)
        if cap:
            return int(cap)
    except Exception:
        pass
    return 64 * 1024 * 1024  # conservative (v7x-sized) fallback


def _vmem_limit_bytes():
    cap = _vmem_capacity_bytes()
    return int(min(cap * 3 // 4, 100 * 1024 * 1024))


def _pick_tile_rows(row_width, n_rows, itemsize=4):
    """Row tile for streaming (norm) kernels: as big as VMEM allows, but keeping
    several grid steps for pipelining / load balance."""
    if n_rows <= 8:
        return n_rows
    cap = _vmem_capacity_bytes()
    budget = cap // 2                              # in x2 + out x2 double buffers
    tile = budget // max(4 * row_width * itemsize, 1)
    tile = max(8, min(int(tile), 2048))
    grid_cap = max(8, _round_up((n_rows + 7) // 8, 8))
    tile = min(tile, grid_cap)
    return max(8, (tile // 8) * 8)


def _pick_linear_tiles(rows, k_in, n_out):
    """(tm, tn) for the matmul kernels.  tn is a multiple of 128 (or the full width
    when n_out <= 128); tm is VMEM-bounded and capped so the parallel grid has >= 2
    steps whenever the row count allows it (v7x dual TensorCores)."""
    cap = _vmem_capacity_bytes()
    budget = int(cap * 0.4)
    if n_out > 128:
        tn = max(128, min(512, (n_out // 128) * 128))
    else:
        tn = n_out

    def vmem_bytes(tm):
        # double buffered: x tile (f32) + W tile (bf16) + out tile (f32) + bias/gamma
        return 2 * (tm * k_in * 4 + k_in * tn * 2 + tm * tn * 4 + tn * 4 + k_in * 4)

    tm = 2048
    while tm > 8 and vmem_bytes(tm) > budget:
        tm //= 2
    if rows >= 8:
        tm = min(tm, max(8, (rows // 8) * 8))
    else:
        tm = rows
    if rows > 8 and pl.cdiv(rows, tm) * pl.cdiv(n_out, tn) < 2:
        tm = max(8, _round_up(pl.cdiv(rows, 2), 8))
    return tm, tn


# ----------------------------------------------------------------------------
# Kernels
# ----------------------------------------------------------------------------
def _rmsnorm_kernel(x_ref, g_ref, o_ref, *, eps_sq):
    """F.normalize(x, dim=-1) * sqrt(dim) * gamma  (sqrt(dim) pre-folded into gamma)."""
    x = x_ref[...].astype(jnp.float32)                         # (tile, dim)
    ss = jnp.sum(x * x, axis=-1, keepdims=True)
    inv = lax.rsqrt(jnp.maximum(ss, eps_sq))                   # == 1/max(||x||, eps)
    o_ref[...] = (x * inv * g_ref[...]).astype(o_ref.dtype)


def _norm_linear_kernel(x_ref, g_ref, w_ref, b_ref, o_ref, *, eps_sq):
    """Fused RMSNorm + (x @ W + b).  W is bf16; accumulate in f32."""
    x = x_ref[...].astype(jnp.float32)                         # (tm, k)
    ss = jnp.sum(x * x, axis=-1, keepdims=True)
    inv = lax.rsqrt(jnp.maximum(ss, eps_sq))
    xn = x * inv * g_ref[...]                                  # gamma already * sqrt(dim)
    acc = jnp.dot(xn.astype(jnp.bfloat16), w_ref[...],
                  preferred_element_type=jnp.float32)          # (tm, tn)
    o_ref[...] = (acc + b_ref[...]).astype(o_ref.dtype)


def _linear_kernel(x_ref, w_ref, b_ref, o_ref):
    """x @ W + b with bf16 MXU operands, f32 accumulation."""
    acc = jnp.dot(x_ref[...].astype(jnp.bfloat16), w_ref[...],
                  preferred_element_type=jnp.float32)
    o_ref[...] = (acc + b_ref[...]).astype(o_ref.dtype)


def _attention_kernel(qkv_ref, nk_ref, nv_ref, m_ref, o_ref, *,
                      heads, dim_head, dim_inner, scale, mask_self_value):
    """Fused L2-distance attention for one batch element, all heads.

    qkv_ref : (1, n, 2*dim_inner)  -- [qk | v] projection, head-major columns.
    nk/nv   : (1, dim_inner)       -- null key / value (head-major columns).
    m_ref   : (1, 1, n)            -- 1.0 = keep key, 0.0 = masked.
    o_ref   : (1, n, dim_inner)    -- lane-dense 'b n (h d)' output (no host merge).

    The null key/value are handled analytically as an extra softmax column, so no
    concat along the sequence axis is needed.  q == k (the module uses one qk proj).
    """
    xqv = qkv_ref[0].astype(jnp.float32)                       # (n, 2*dim_inner)
    km = m_ref[0]                                              # (1, n)
    nk_all = nk_ref[...].astype(jnp.float32)                   # (1, dim_inner)
    nv_all = nv_ref[...].astype(jnp.float32)

    n = xqv.shape[0]
    row = lax.broadcasted_iota(jnp.int32, (n, n), 0)
    col = lax.broadcasted_iota(jnp.int32, (n, n), 1)
    self_mask = col == row                                     # query i vs real key i
    key_keep = km > 0.5                                        # (1, n) -> bcast rows

    contract = (((1,), (1,)), ((), ()))                        # contract last dims
    ones_row = jnp.ones((1, dim_head), jnp.float32)

    outs = []
    for h in range(heads):                                     # static unroll
        q = xqv[:, h * dim_head:(h + 1) * dim_head]            # (n, dh); k == q
        v = xqv[:, dim_inner + h * dim_head: dim_inner + (h + 1) * dim_head]
        nk = nk_all[:, h * dim_head:(h + 1) * dim_head]        # (1, dh)
        nv = nv_all[:, h * dim_head:(h + 1) * dim_head]        # (1, dh)

        qq = jnp.sum(q * q, axis=-1, keepdims=True)            # (n, 1)
        kk = lax.dot_general(ones_row, q * q, contract,
                             preferred_element_type=jnp.float32)          # (1, n)
        qk = lax.dot_general(q, q, contract,
                             preferred_element_type=jnp.float32)          # (n, n)
        d2 = jnp.maximum(qq + kk - 2.0 * qk, 0.0)
        sim = -jnp.sqrt(d2) * scale                            # -cdist * scale
        sim = jnp.where(self_mask, mask_self_value, sim)
        sim = jnp.where(key_keep, sim, MASK_KEY_VALUE)

        nkk = jnp.sum(nk * nk, axis=-1, keepdims=True)         # (1, 1)
        qnk = lax.dot_general(q, nk, contract,
                              preferred_element_type=jnp.float32)         # (n, 1)
        dn2 = jnp.maximum(qq + nkk - 2.0 * qnk, 0.0)
        sim_null = -jnp.sqrt(dn2) * scale                      # (n, 1) -- never masked

        smax = jnp.maximum(jnp.max(sim, axis=-1, keepdims=True), sim_null)
        p = jnp.exp(sim - smax)                                # (n, n)
        p_null = jnp.exp(sim_null - smax)                      # (n, 1)
        denom = jnp.sum(p, axis=-1, keepdims=True) + p_null
        inv = pl.reciprocal(denom, approx=True)                # EUP slot

        o_h = (jnp.dot(p.astype(jnp.bfloat16), v.astype(jnp.bfloat16),
                       preferred_element_type=jnp.float32)
               + p_null * nv) * inv                            # (n, dh)
        outs.append(o_h)

    out = outs[0] if heads == 1 else jnp.concatenate(outs, axis=-1)  # (n, dim_inner)
    o_ref[0] = out.astype(o_ref.dtype)


# ----------------------------------------------------------------------------
# Wrappers
# ----------------------------------------------------------------------------
def rmsnorm(x, gscaled, *, eps=1e-12):
    """Standalone RMSNorm (used only for the final norm; all other norms are fused)."""
    shape = x.shape
    dim = shape[-1]
    rows = math.prod(shape[:-1]) if len(shape) > 1 else 1
    x2 = x.reshape(rows, dim)
    tile = _pick_tile_rows(dim, rows)
    out = pl.pallas_call(
        partial(_rmsnorm_kernel, eps_sq=float(eps) ** 2),
        out_shape=jax.ShapeDtypeStruct((rows, dim), x.dtype),
        grid_spec=pltpu.PrefetchScalarGridSpec(
            num_scalar_prefetch=0,
            grid=(pl.cdiv(rows, tile),),
            in_specs=[
                pl.BlockSpec((tile, dim), lambda i: (i, 0)),
                pl.BlockSpec((1, dim), lambda i: (0, 0)),
            ],
            out_specs=pl.BlockSpec((tile, dim), lambda i: (i, 0)),
        ),
        compiler_params=pltpu.CompilerParams(
            dimension_semantics=("parallel",),
            vmem_limit_bytes=_vmem_limit_bytes(),
        ),
    )(x2, gscaled)
    return out.reshape(shape)


def matmul(x2d, w, b, gamma=None, *, eps=1e-12):
    """y = [rmsnorm](x) @ W + b.  W is bf16, bias f32, gamma (if given) pre-scaled."""
    rows, k_in = x2d.shape
    n_out = w.shape[1]
    tm, tn = _pick_linear_tiles(rows, k_in, n_out)
    grid = (pl.cdiv(rows, tm), pl.cdiv(n_out, tn))

    x_spec = pl.BlockSpec((tm, k_in), lambda i, j: (i, 0))
    w_spec = pl.BlockSpec((k_in, tn), lambda i, j: (0, j))
    b_spec = pl.BlockSpec((1, tn), lambda i, j: (0, j))
    o_spec = pl.BlockSpec((tm, tn), lambda i, j: (i, j))
    cp = pltpu.CompilerParams(
        dimension_semantics=("parallel", "parallel"),
        vmem_limit_bytes=_vmem_limit_bytes(),
    )
    out_shape = jax.ShapeDtypeStruct((rows, n_out), x2d.dtype)

    if gamma is None:
        return pl.pallas_call(
            _linear_kernel,
            out_shape=out_shape,
            grid_spec=pltpu.PrefetchScalarGridSpec(
                num_scalar_prefetch=0, grid=grid,
                in_specs=[x_spec, w_spec, b_spec], out_specs=o_spec),
            compiler_params=cp,
        )(x2d, w, b)

    g_spec = pl.BlockSpec((1, k_in), lambda i, j: (0, 0))
    return pl.pallas_call(
        partial(_norm_linear_kernel, eps_sq=float(eps) ** 2),
        out_shape=out_shape,
        grid_spec=pltpu.PrefetchScalarGridSpec(
            num_scalar_prefetch=0, grid=grid,
            in_specs=[x_spec, g_spec, w_spec, b_spec], out_specs=o_spec),
        compiler_params=cp,
    )(x2d, gamma, w, b)


def attention_core(qkv, null_k, null_v, kmask, *, heads, dim_head, scale,
                   mask_self_value):
    b, n, two_inner = qkv.shape
    dim_inner = heads * dim_head
    kernel = partial(_attention_kernel, heads=heads, dim_head=dim_head,
                     dim_inner=dim_inner, scale=scale,
                     mask_self_value=mask_self_value)
    # TODO(synk): add flash-style KV tiling (online softmax) before sequence length
    # grows; full (n, n) sim per head is fine at these sizes but O(n^2) in VMEM.
    return pl.pallas_call(
        kernel,
        out_shape=jax.ShapeDtypeStruct((b, n, dim_inner), qkv.dtype),
        grid_spec=pltpu.PrefetchScalarGridSpec(
            num_scalar_prefetch=0,
            grid=(b,),
            in_specs=[
                pl.BlockSpec((1, n, two_inner), lambda i: (i, 0, 0)),
                pl.BlockSpec((1, dim_inner), lambda i: (0, 0)),
                pl.BlockSpec((1, dim_inner), lambda i: (0, 0)),
                pl.BlockSpec((1, 1, n), lambda i: (i, 0, 0)),
            ],
            out_specs=pl.BlockSpec((1, n, dim_inner), lambda i: (i, 0, 0)),
        ),
        compiler_params=pltpu.CompilerParams(
            dimension_semantics=("parallel",),
            vmem_limit_bytes=_vmem_limit_bytes(),
        ),
    )(qkv, null_k, null_v, kmask)


# ----------------------------------------------------------------------------
# Module-level forward passes
# ----------------------------------------------------------------------------
def text_attention(p, x, heads, dim_head, kmask):
    b, n, dim = x.shape
    dim_inner = heads * dim_head
    # Fused norm + merged [qk|v] projection (one matmul, lane-dense output).
    qkv = matmul(x.reshape(b * n, dim), p["w_qkv"], p["b_qkv"], gamma=p["g"])
    qkv = qkv.reshape(b, n, 2 * dim_inner)
    attn_out = attention_core(
        qkv, p["null_k"], p["null_v"], kmask,
        heads=heads, dim_head=dim_head,
        scale=dim_head ** -0.5, mask_self_value=MASK_SELF_VALUE)     # (b, n, h*d)
    out = matmul(attn_out.reshape(b * n, dim_inner), p["w_out"], p["b_out"])
    return out.reshape(b, n, dim)


def feed_forward(p, x):
    b, n, dim = x.shape
    h = matmul(x.reshape(b * n, dim), p["w1"], p["b1"], gamma=p["g"])  # fused norm
    # TODO(synk): exact erf-GELU stays in plain JAX between the two Pallas matmuls
    # (no guaranteed erf lowering inside Mosaic); matches nn.GELU() default.
    h = jax.nn.gelu(h, approximate=False)
    out = matmul(h, p["w2"], p["b2"])
    return out.reshape(b, n, dim)


def transformer_forward(prepared, x, mask=None):
    heads, dim_head = prepared["heads"], prepared["dim_head"]
    b, n, _ = x.shape
    if mask is None:
        kmask = jnp.ones((b, 1, n), jnp.float32)
    else:
        kmask = mask.astype(jnp.float32).reshape(b, 1, n)
    for layer in prepared["layers"]:
        x = text_attention(layer["attn"], x, heads, dim_head, kmask) + x
        x = feed_forward(layer["ff"], x) + x
    return rmsnorm(x, prepared["g"])


# ----------------------------------------------------------------------------
# Parameter init (mirrors the PyTorch module) + one-time kernel-friendly prep
# ----------------------------------------------------------------------------
def init_transformer_params(key, dim, depth, dim_head, heads, ff_mult):
    dim_inner = dim_head * heads
    dim_hidden = int(dim * ff_mult)
    layers = []
    for _ in range(depth):
        key, *ks = jax.random.split(key, 9)
        attn = {
            "gamma": jnp.ones((dim,), jnp.float32),
            "w_qk": jax.random.normal(ks[0], (dim, dim_inner), jnp.float32) / (dim ** 0.5),
            "w_v": jax.random.normal(ks[1], (dim, dim_inner), jnp.float32) / (dim ** 0.5),
            "null_kv": jax.random.normal(ks[2], (2, heads, dim_head), jnp.float32),
            "w_out": jax.random.normal(ks[3], (dim_inner, dim), jnp.float32) / (dim_inner ** 0.5),
        }
        ff = {
            "gamma": jnp.ones((dim,), jnp.float32),
            "w1": jax.random.normal(ks[4], (dim, dim_hidden), jnp.float32) / (dim ** 0.5),
            "b1": jax.random.normal(ks[5], (dim_hidden,), jnp.float32) * 0.02,
            "w2": jax.random.normal(ks[6], (dim_hidden, dim), jnp.float32) / (dim_hidden ** 0.5),
            "b2": jax.random.normal(ks[7], (dim,), jnp.float32) * 0.02,
        }
        layers.append({"attn": attn, "ff": ff})
    return {"layers": layers, "gamma": jnp.ones((dim,), jnp.float32),
            "heads": heads, "dim_head": dim_head}


def prepare_params(params):
    """One-time packing: gamma*sqrt(dim), merged bf16 qkv weight, bf16 weights,
    f32 bias rows, reshaped null kv.  Everything the wrappers would otherwise
    recompute every forward call."""
    heads, dim_head = params["heads"], params["dim_head"]
    dim_inner = heads * dim_head
    prep_layers = []
    for layer in params["layers"]:
        a, f = layer["attn"], layer["ff"]
        dim = a["gamma"].shape[0]
        dim_hidden = f["w1"].shape[1]
        attn = {
            "g": (a["gamma"].astype(jnp.float32) * (dim ** 0.5)).reshape(1, dim),
            "w_qkv": jnp.concatenate([a["w_qk"], a["w_v"]], axis=1).astype(jnp.bfloat16),
            "b_qkv": jnp.zeros((1, 2 * dim_inner), jnp.float32),
            "w_out": a["w_out"].astype(jnp.bfloat16),
            "b_out": jnp.zeros((1, dim), jnp.float32),
            "null_k": a["null_kv"][0].reshape(1, dim_inner).astype(jnp.float32),
            "null_v": a["null_kv"][1].reshape(1, dim_inner).astype(jnp.float32),
        }
        ff = {
            "g": (f["gamma"].astype(jnp.float32) * (dim ** 0.5)).reshape(1, dim),
            "w1": f["w1"].astype(jnp.bfloat16),
            "b1": f["b1"].astype(jnp.float32).reshape(1, dim_hidden),
            "w2": f["w2"].astype(jnp.bfloat16),
            "b2": f["b2"].astype(jnp.float32).reshape(1, dim),
        }
        prep_layers.append({"attn": attn, "ff": ff})
    dim = params["gamma"].shape[0]
    return {"layers": prep_layers,
            "g": (params["gamma"].astype(jnp.float32) * (dim ** 0.5)).reshape(1, dim),
            "heads": heads, "dim_head": dim_head}


# ----------------------------------------------------------------------------
# Pure-JAX reference (mirrors the PyTorch module)
# ----------------------------------------------------------------------------
def _ref_rmsnorm(x, gamma):
    norm = jnp.sqrt(jnp.sum(jnp.square(x), axis=-1, keepdims=True))
    return x / jnp.maximum(norm, 1e-12) * (x.shape[-1] ** 0.5) * gamma


def _ref_attention(p, x, heads, dim_head, mask):
    b, n, dim = x.shape
    xn = _ref_rmsnorm(x, p["gamma"])
    qk = (xn @ p["w_qk"]).reshape(b, n, heads, dim_head).transpose(0, 2, 1, 3).reshape(b * heads, n, dim_head)
    v = (xn @ p["w_v"]).reshape(b, n, heads, dim_head).transpose(0, 2, 1, 3).reshape(b * heads, n, dim_head)
    nk = jnp.broadcast_to(p["null_kv"][0][None], (b, heads, dim_head)).reshape(b * heads, 1, dim_head)
    nv = jnp.broadcast_to(p["null_kv"][1][None], (b, heads, dim_head)).reshape(b * heads, 1, dim_head)
    k = jnp.concatenate([nk, qk], axis=1)
    vv = jnp.concatenate([nv, v], axis=1)
    q = qk
    diff = q[:, :, None, :] - k[:, None, :, :]
    dist = jnp.sqrt(jnp.maximum(jnp.sum(diff * diff, axis=-1), 0.0))
    sim = -dist * (dim_head ** -0.5)
    self_mask = (jnp.arange(n + 1)[None, :] == jnp.arange(n)[:, None] + 1)
    sim = jnp.where(self_mask[None], MASK_SELF_VALUE, sim)
    if mask is not None:
        m = jnp.pad(mask, ((0, 0), (1, 0)), constant_values=True)
        m = jnp.repeat(m, heads, axis=0)[:, None, :]
        sim = jnp.where(m, sim, -float(jnp.finfo(jnp.float32).max))
    attn = jax.nn.softmax(sim, axis=-1)
    out = jnp.einsum('bij,bjd->bid', attn, vv)
    out = out.reshape(b, heads, n, dim_head).transpose(0, 2, 1, 3).reshape(b, n, heads * dim_head)
    return out @ p["w_out"]


def _ref_ff(p, x):
    xn = _ref_rmsnorm(x, p["gamma"])
    h = jax.nn.gelu(xn @ p["w1"] + p["b1"], approximate=False)
    return h @ p["w2"] + p["b2"]


def _ref_transformer(params, x, mask=None):
    heads, dim_head = params["heads"], params["dim_head"]
    for layer in params["layers"]:
        x = _ref_attention(layer["attn"], x, heads, dim_head, mask) + x
        x = _ref_ff(layer["ff"], x) + x
    return _ref_rmsnorm(x, params["gamma"])


def _bf16_weight_params(params):
    """Reference params with matmul weights round-tripped through bf16, matching the
    deliberate weight quantization in the Pallas path (isolates kernel correctness)."""
    def rt(w):
        return w.astype(jnp.bfloat16).astype(jnp.float32)
    new_layers = []
    for layer in params["layers"]:
        a, f = layer["attn"], layer["ff"]
        new_layers.append({
            "attn": {**a, "w_qk": rt(a["w_qk"]), "w_v": rt(a["w_v"]), "w_out": rt(a["w_out"])},
            "ff": {**f, "w1": rt(f["w1"]), "w2": rt(f["w2"])},
        })
    return {**params, "layers": new_layers}


# ----------------------------------------------------------------------------
if __name__ == "__main__":
    key = jax.random.PRNGKey(0)
    batch, seq, dim = 2, 8, 32
    depth, heads, dim_head, ff_mult = 1, 2, 16, 4

    k_x, k_p = jax.random.split(key)
    x = jax.random.normal(k_x, (batch, seq, dim), dtype=jnp.float32)
    params = init_transformer_params(k_p, dim, depth, dim_head, heads, ff_mult)
    prepared = prepare_params(params)

    # --- unmasked path ---
    out = jax.block_until_ready(transformer_forward(prepared, x, mask=None))
    assert out.shape == x.shape
    # strict check vs. a reference using the same bf16-rounded weights
    ref_q = _ref_transformer(_bf16_weight_params(params), x, None)
    assert jnp.allclose(out, ref_q, atol=2e-2, rtol=2e-2), float(jnp.max(jnp.abs(out - ref_q)))
    # loose sanity check vs. the full-f32 module (includes deliberate bf16 weight quant)
    ref_f = _ref_transformer(params, x, None)
    assert jnp.allclose(out, ref_f, atol=1e-1, rtol=1e-1), float(jnp.max(jnp.abs(out - ref_f)))

    # --- masked path ---
    mask = jnp.array([[True] * seq, [True] * 5 + [False] * 3])
    out_m = jax.block_until_ready(transformer_forward(prepared, x, mask=mask))
    ref_qm = _ref_transformer(_bf16_weight_params(params), x, mask)
    assert jnp.allclose(out_m, ref_qm, atol=2e-2, rtol=2e-2), float(jnp.max(jnp.abs(out_m - ref_qm)))

    print("KERNEL_OK")
</pallas_src>

<mosaic_0001>
module attributes {stable_mosaic.version = 11 : i64} {
  func.func @_norm_linear_kernel(%arg0: i32, %arg1: i32, %arg2: memref<8x32xf32, #tpu.memory_space<vmem>>, %arg3: memref<1x32xf32, #tpu.memory_space<vmem>>, %arg4: memref<32x64xbf16, #tpu.memory_space<vmem>>, %arg5: memref<1x64xf32, #tpu.memory_space<vmem>>, %arg6: memref<8x64xf32, #tpu.memory_space<vmem>>) attributes {dimension_semantics = [#tpu.dimension_semantics<parallel>, #tpu.dimension_semantics<parallel>], iteration_bounds = array<i64: 2, 1>, scalar_prefetch = 0 : i64, scratch_operands = 0 : i64, tpu.core_type = #tpu.core_type<tc>, window_params = [{transform_indices = @transform_0, window_bounds = array<i64: 8, 32>}, {pipeline_mode = #tpu.pipeline_mode<synchronous>, transform_indices = @transform_1, window_bounds = array<i64: 1, 32>}, {transform_indices = @transform_2, window_bounds = array<i64: 32, 64>}, {transform_indices = @transform_3, window_bounds = array<i64: 1, 64>}, {transform_indices = @transform_4, window_bounds = array<i64: 8, 64>}]} {
    %c0 = arith.constant 0 : index
    %c0_0 = arith.constant 0 : index
    %0 = vector.load %arg2[%c0, %c0_0] : memref<8x32xf32, #tpu.memory_space<vmem>>, vector<8x32xf32>
    %1 = arith.mulf %0, %0 : vector<8x32xf32>
    %cst = arith.constant dense<0.000000e+00> : vector<8xf32>
    %2 = vector.multi_reduction <add>, %1, %cst [1] : vector<8x32xf32> to vector<8xf32>
    %3 = vector.shape_cast %2 : vector<8xf32> to vector<8x1xf32>
    %cst_1 = arith.constant 1.000000e-24 : f32
    %4 = vector.broadcast %cst_1 : f32 to vector<8x1xf32>
    %5 = arith.maximumf %3, %4 : vector<8x1xf32>
    %6 = math.rsqrt %5 : vector<8x1xf32>
    %7 = vector.broadcast %6 : vector<8x1xf32> to vector<8x32xf32>
    %8 = arith.mulf %0, %7 : vector<8x32xf32>
    %c0_2 = arith.constant 0 : index
    %c0_3 = arith.constant 0 : index
    %9 = vector.load %arg3[%c0_2, %c0_3] : memref<1x32xf32, #tpu.memory_space<vmem>>, vector<1x32xf32>
    %10 = vector.broadcast %9 : vector<1x32xf32> to vector<8x32xf32>
    %11 = arith.mulf %8, %10 : vector<8x32xf32>
    %12 = arith.truncf %11 : vector<8x32xf32> to vector<8x32xbf16>
    %c0_4 = arith.constant 0 : index
    %c0_5 = arith.constant 0 : index
    %13 = vector.load %arg4[%c0_4, %c0_5] : memref<32x64xbf16, #tpu.memory_space<vmem>>, vector<32x64xbf16>
    %cst_6 = arith.constant dense<0.000000e+00> : vector<8x64xf32>
    %14 = tpu.matmul %12, %13, %cst_6 {dimension_numbers = #tpu.dot_dimension_numbers<[1], [0], [0], [1], [0, 0, 1, 1], [], []>} : vector<8x32xbf16>, vector<32x64xbf16>, vector<8x64xf32> -> vector<8x64xf32>
    %c0_7 = arith.constant 0 : index
    %c0_8 = arith.constant 0 : index
    %15 = vector.load %arg5[%c0_7, %c0_8] : memref<1x64xf32, #tpu.memory_space<vmem>>, vector<1x64xf32>
    %16 = vector.broadcast %15 : vector<1x64xf32> to vector<8x64xf32>
    %17 = arith.addf %14, %16 : vector<8x64xf32>
    %c0_9 = arith.constant 0 : index
    %c0_10 = arith.constant 0 : index
    %18 = vector.load %arg6[%c0_9, %c0_10] : memref<8x64xf32, #tpu.memory_space<vmem>>, vector<8x64xf32>
    tpu.vector_store %arg6[%c0_9, %c0_10], %17 {strides = array<i32>} : memref<8x64xf32, #tpu.memory_space<vmem>>, vector<8x64xf32>,
    return
  }
  func.func @transform_0(%arg0: i32, %arg1: i32) -> (i32, i32) {
    %c0_i32 = arith.constant 0 : i32
    %c0_i32_0 = arith.constant 0 : i32
    return %arg0, %c0_i32 : i32, i32
  }
  func.func @transform_1(%arg0: i32, %arg1: i32) -> (i32, i32) {
    %c0_i32 = arith.constant 0 : i32
    %c0_i32_0 = arith.constant 0 : i32
    %c0_i32_1 = arith.constant 0 : i32
    return %c0_i32, %c0_i32_0 : i32, i32
  }
  func.func @transform_2(%arg0: i32, %arg1: i32) -> (i32, i32) {
    %c0_i32 = arith.constant 0 : i32
    %c0_i32_0 = arith.constant 0 : i32
    return %c0_i32, %arg1 : i32, i32
  }
  func.func @transform_3(%arg0: i32, %arg1: i32) -> (i32, i32) {
    %c0_i32 = arith.constant 0 : i32
    %c0_i32_0 = arith.constant 0 : i32
    return %c0_i32, %arg1 : i32, i32
  }
  func.func @transform_4(%arg0: i32, %arg1: i32) -> (i32, i32) {
    %c0_i32 = arith.constant 0 : i32
    return %arg0, %arg1 : i32, i32
  }
}

</mosaic_0001>

<llo_original>
// kernel: tpu_custom_call.1
$region0: #{tpu_custom_call.1}
  #allocation0 [shape = 'u32[]', space=smem, size = 0x4, offset = 0x4, fixed_abs, tag = 'smem constant byte address 0x4 - core index']
  #allocation1 [shape = 'u32[72,128]{1,0:T(1,128)}', space=vmem, size = 0x9000, scoped, tag = 'internal scratch']
  %s0 = inlined_call_operand.hbm [shape: f32[16,32], index: 0, kind: input, shape index: {}]
  %s1 = inlined_call_operand.hbm [shape: f32[1,32], index: 1, kind: input, shape index: {}]
  %s2 = inlined_call_operand.hbm [shape: bf16[32,64], index: 2, kind: input, shape index: {}]
  %s3 = inlined_call_operand.vmem [shape: f32[1,64], index: 3, kind: input, shape index: {}]
  %s4 = inlined_call_operand.hbm [shape: f32[16,64], index: 4, kind: output, shape index: {}]
  %s5 = sld [smem:[#allocation0]]
  $region61: #{tpu_custom_call.1} parent=0
    _
  %s7 = ssub.s32 1, %s5
  %s8 = scalar_select 0, %s7, %s5
  $region1: #{tpu_custom_call.1} parent=0
    #allocation2 [shape = 'u8[8192]{0}', space=vmem, size = 0x2000, scoped, tag = 'input window, operand 0']
    #allocation3 [shape = 's32[2]{0}', space=sflag, size = 0x8, scoped, tag = 'scoped memory for tpu_custom_call.1']
    #allocation4 [shape = 's32[2]{0}', space=sflag, size = 0x8, scoped, tag = 'scoped memory for tpu_custom_call.1']
    #allocation5 [shape = 'u8[512]{0}', space=vmem, size = 0x400, scoped, tag = 'input window, operand 1, single buffered']
    #allocation6 [shape = 's32[1]{0}', space=sflag, size = 0x4, scoped, tag = 'scoped memory for tpu_custom_call.1']
    #allocation7 [shape = 'u8[8192]{0}', space=vmem, size = 0x2000, scoped, tag = 'input window, operand 2, single buffered']
    #allocation8 [shape = 'u8[8192]{0}', space=vmem, size = 0x2000, scoped, tag = 'output window, operand 0']
    %9 = vsyncpa [#allocation3], 0
    %s10 = scalar_lea.sflag [#allocation3], 1
    %11 = vsyncpa %s10, 0
    %12 = vsyncpa [#allocation6], 0
    %13 = vsyncpa [#allocation4], 0
    %s14 = scalar_lea.sflag [#allocation4], 1
    %15 = vsyncpa %s14, 0
    loop: start=0, step=1, limit=4
    $region2: #{tpu_custom_call.1} parent=1 // loop_pre_header
      _
    $region3: #{tpu_custom_call.1} parent=1 // loop_header
      %s17 = sphi 0, %s21
      %p18 = scmp.ge.s32.totalorder %s17, 4
      %s24 = sphi 0, %s36
      %s25 = sphi 0, %s32
      %s26 = sphi 0, %s24
      %s27 = sphi 0, %s25
      %s28 = sphi 0, %s26
      %s29 = sphi 0, %s27
      %s39 = sphi 0, %s41
      %s42 = sphi 0, %s39
      %s43 = sphi 0, %s42
      %s59 = sphi 0, %s43
      %s63 = sphi 0, %s63
      %s65 = sphi 0, %s63
      %s66 = sphi 0, %s65
      %s80 = sphi 0, %s66
      %s86 = sphi 0, %s88
      %s89 = sphi 0, %s86
      %s90 = sphi 0, %s89
      %s106 = sphi 0, %s90
      %s112 = sphi 0, %s114
      %s115 = sphi 0, %s112
      %s116 = sphi 0, %s115
      %s132 = sphi 0, %s116
      %s140 = sphi 0, %s142
      %s143 = sphi 0, %s140
      %s144 = sphi 0, %s143
      %s160 = sphi 0, %s144
    $region4: #{tpu_custom_call.1} parent=1 // loop_header_branch
      %20 = sbr.rel (%p18) target = $region8
    $region5: #{tpu_custom_call.1} parent=1 // loop_body
      %s22 = ssub.s32 %s17, 1
      %s23 = ssub.s32 %s17, 2
      %s30 = sadd.s32 1, %s25
      %p31 = scmp.ge.s32.totalorder %s30, 1
      %s32 = scalar_select %p31, 0, %s30
      %s33 = sadd.s32 1, %s24
      %s34 = scalar_select %p31, %s33, %s24
      %p35 = scmp.ge.s32.totalorder %s34, 2
      %s36 = scalar_select %p35, 0, %s34
      %s37 = ssub.s32 %s24, %s36
      %p38 = scmp.eq.s32.totalorder %s37, 0
      %s40 = sadd.s32 %s39, 1
      %s41 = scalar_select %p38, %s39, %s40
      %p44 = pneg %p38
      %p45 = scmp.eq.s32.totalorder %s17, 1
      %p46 = por %p44, %p45
      %p47 = scmp.ne.s32.totalorder %s39, %s42
      %p48 = scmp.eq.s32.totalorder %s17, 0
      %p49 = por %p47, %p48
      %p50 = scmp.ne.s32.totalorder %s39, %s42
      %p51 = scmp.eq.s32.totalorder %s22, 1
      %p52 = por %p50, %p51
      %p53 = scmp.ne.s32.totalorder %s42, %s43
      %p54 = scmp.eq.s32.totalorder %s22, 0
      %p55 = por %p53, %p54
      %p56 = scmp.ne.s32.totalorder %s42, %s43
      %p57 = scmp.eq.s32.totalorder %s23, 1
      %p58 = por %p56, %p57
      %p60 = scmp.ne.s32.totalorder %s43, %s59
      %p61 = scmp.eq.s32.totalorder %s23, 0
      %p62 = por %p60, %p61
      %s64 = sadd.s32 %s63, 1
      %p67 = scmp.eq.s32.totalorder %s17, 1
      %p68 = scmp.ne.s32.totalorder %s63, %s65
      %p69 = scmp.eq.s32.totalorder %s17, 0
      %p70 = por %p68, %p69
      %p71 = scmp.ne.s32.totalorder %s63, %s65
      %p72 = scmp.eq.s32.totalorder %s22, 1
      %p73 = por %p71, %p72
      %p74 = scmp.ne.s32.totalorder %s65, %s66
      %p75 = scmp.eq.s32.totalorder %s22, 0
      %p76 = por %p74, %p75
      %p77 = scmp.ne.s32.totalorder %s65, %s66
      %p78 = scmp.eq.s32.totalorder %s23, 1
      %p79 = por %p77, %p78
      %p81 = scmp.ne.s32.totalorder %s66, %s80
      %p82 = scmp.eq.s32.totalorder %s23, 0
      %p83 = por %p81, %p82
      %s84 = ssub.s32 %s25, %s32
      %p85 = scmp.eq.s32.totalorder %s84, 0
      %s87 = sadd.s32 %s86, 1
      %s88 = scalar_select %p85, %s86, %s87
      %p91 = pneg %p85
      %p92 = scmp.eq.s32.totalorder %s17, 1
      %p93 = por %p91, %p92
      %p94 = scmp.ne.s32.totalorder %s86, %s89
      %p95 = scmp.eq.s32.totalorder %s17, 0
      %p96 = por %p94, %p95
      %p97 = scmp.ne.s32.totalorder %s86, %s89
      %p98 = scmp.eq.s32.totalorder %s22, 1
      %p99 = por %p97, %p98
      %p100 = scmp.ne.s32.totalorder %s89, %s90
      %p101 = scmp.eq.s32.totalorder %s22, 0
      %p102 = por %p100, %p101
      %p103 = scmp.ne.s32.totalorder %s89, %s90
      %p104 = scmp.eq.s32.totalorder %s23, 1
      %p105 = por %p103, %p104
      %p107 = scmp.ne.s32.totalorder %s90, %s106
      %p108 = scmp.eq.s32.totalorder %s23, 0
      %p109 = por %p107, %p108
      %s110 = ssub.s32 %s25, %s32
      %p111 = scmp.eq.s32.totalorder %s110, 0
      %s113 = sadd.s32 %s112, 1
      %s114 = scalar_select %p111, %s112, %s113
      %p117 = pneg %p111
      %p118 = scmp.eq.s32.totalorder %s17, 1
      %p119 = por %p117, %p118
      %p120 = scmp.ne.s32.totalorder %s112, %s115
      %p121 = scmp.eq.s32.totalorder %s17, 0
      %p122 = por %p120, %p121
      %p123 = scmp.ne.s32.totalorder %s112, %s115
      %p124 = scmp.eq.s32.totalorder %s22, 1
      %p125 = por %p123, %p124
      %p126 = scmp.ne.s32.totalorder %s115, %s116
      %p127 = scmp.eq.s32.totalorder %s22, 0
      %p128 = por %p126, %p127
      %p129 = scmp.ne.s32.totalorder %s115, %s116
      %p130 = scmp.eq.s32.totalorder %s23, 1
      %p131 = por %p129, %p130
      %p133 = scmp.ne.s32.totalorder %s116, %s132
      %p134 = scmp.eq.s32.totalorder %s23, 0
      %p135 = por %p133, %p134
      %s136 = ssub.s32 %s24, %s36
      %s137 = ssub.s32 %s25, %s32
      %s138 = sor.u32 %s136, %s137
      %p139 = scmp.eq.s32.totalorder %s138, 0
      %s141 = sadd.s32 %s140, 1
      %s142 = scalar_select %p139, %s140, %s141
      %p145 = pneg %p139
      %p146 = scmp.eq.s32.totalorder %s17, 1
      %p147 = por %p145, %p146
      %p148 = scmp.ne.s32.totalorder %s140, %s143
      %p149 = scmp.eq.s32.totalorder %s17, 0
      %p150 = por %p148, %p149
      %p151 = scmp.ne.s32.totalorder %s140, %s143
      %p152 = scmp.eq.s32.totalorder %s22, 1
      %p153 = por %p151, %p152
      %p154 = scmp.ne.s32.totalorder %s143, %s144
      %p155 = scmp.eq.s32.totalorder %s22, 0
      %p156 = por %p154, %p155
      %p157 = scmp.ne.s32.totalorder %s143, %s144
      %p158 = scmp.eq.s32.totalorder %s23, 1
      %p159 = por %p157, %p158
      %p161 = scmp.ne.s32.totalorder %s144, %s160
      %p162 = scmp.eq.s32.totalorder %s23, 0
      %p163 = por %p161, %p162
      %p164 = scmp.le.s32.totalorder 1, %s17
      %p165 = scmp.lt.s32.totalorder %s17, 3
      %p166 = pnand %p164, %p165
      %p167 = pneg %p166
      // Predicated region
      $region9: #{tpu_custom_call.1} parent=5 // pred_check
        _
      $region10: #{tpu_custom_call.1} parent=5 // pred_check_branch
        %169 = sbr.rel (%p166) target = $region12
      $region11: #{tpu_custom_call.1} parent=5 // pred_region
        %s170 = ssub.s32 %s17, 1
        // Predicated region
        $region13: #{tpu_custom_call.1} parent=11 // pred_check
          %p171 = pneg %p76
        $region14: #{tpu_custom_call.1} parent=11 // pred_check_branch
          %173 = sbr.rel (%p171) target = $region16
        $region15: #{tpu_custom_call.1} parent=11 // pred_region
          %175 = vsyncadd [#allocation6], 0
          %s177 = sshll.u32 %s1, 4
          %s178 = int_to_ptr.hbm [resolvable:$true] %s177
          %s179 = sshll.u32 [#allocation5], 4
          %s180 = int_to_ptr.vmem [resolvable:$true] %s179
          %182 = dma.hbm_to_vmem [thread:$0]  %s178, 16, %s180, [#allocation6]
        $region16: #{tpu_custom_call.1} parent=11 // pred_fallthru
          _
        // Predicated region
        $region17: #{tpu_custom_call.1} parent=11 // pred_check
          %p183 = pneg %p102
        $region18: #{tpu_custom_call.1} parent=11 // pred_check_branch
          %185 = sbr.rel (%p183) target = $region20
        $region19: #{tpu_custom_call.1} parent=11 // pred_region
          %187 = vsyncadd [#allocation6], 0
          %s188 = smul.addr %s27, 4
          %s189 = scalar_lea.hbm %s2, %s188
          %s190 = sshll.u32 %s189, 4
          %s191 = int_to_ptr.hbm [resolvable:$true] %s190
          %s192 = sshll.u32 [#allocation7], 4
          %s193 = int_to_ptr.vmem [resolvable:$true] %s192
          %198 = dma.hbm_to_vmem [thread:$0]  %s191, 256, %s193, [#allocation6], 64, 64, 4
        $region20: #{tpu_custom_call.1} parent=11 // pred_fallthru
          _
        // Predicated region
        $region21: #{tpu_custom_call.1} parent=11 // pred_check
          %p199 = pneg %p128
        $region22: #{tpu_custom_call.1} parent=11 // pred_check_branch
          %201 = sbr.rel (%p199) target = $region24
        $region23: #{tpu_custom_call.1} parent=11 // pred_region
          %p202 = scmp.lt.s32.totalorder %s27, 0
          %s203 = scalar_select %p202, %s27, 0
          %s204 = scalar_lea.vmem %s3, %s203
        $region24: #{tpu_custom_call.1} parent=11 // pred_fallthru
          _
      $region12: #{tpu_custom_call.1} parent=5 // pred_fallthru
        _
      %p205 = scmp.lt.s32.totalorder %s17, 2
      // Predicated region
      $region25: #{tpu_custom_call.1} parent=5 // pred_check
        %p206 = pneg %p205
      $region26: #{tpu_custom_call.1} parent=5 // pred_check_branch
        %208 = sbr.rel (%p206) target = $region28
      $region27: #{tpu_custom_call.1} parent=5 // pred_region
        // Predicated region
        $region29: #{tpu_custom_call.1} parent=27 // pred_check
          %p209 = pneg %p49
        $region30: #{tpu_custom_call.1} parent=27 // pred_check_branch
          %211 = sbr.rel (%p209) target = $region32
        $region31: #{tpu_custom_call.1} parent=27 // pred_region
          %s212 = sand.u32 %s39, 1
          %s213 = scalar_lea.sflag [#allocation3], %s212
          %s214 = sand.u32 %s39, 1
          %s215 = smul.addr %s214, 8
          %s216 = scalar_lea.vmem [#allocation2], %s215
          %218 = vsyncadd %s213, 0
          %s219 = smul.addr %s24, 8
          %s220 = scalar_lea.hbm %s0, %s219
          %s222 = sshll.u32 %s220, 4
          %s223 = int_to_ptr.hbm [resolvable:$true] %s222
          %s224 = sshll.u32 %s216, 4
          %s225 = int_to_ptr.vmem [resolvable:$true] %s224
          %227 = dma.hbm_to_vmem [thread:$0]  %s223, 128, %s225, %s213
        $region32: #{tpu_custom_call.1} parent=27 // pred_fallthru
          _
      $region28: #{tpu_custom_call.1} parent=5 // pred_fallthru
        _
      %p228 = scmp.le.s32.totalorder 1, %s17
      %p229 = scmp.lt.s32.totalorder %s17, 3
      %p230 = pnand %p228, %p229
      %p231 = pneg %p230
      // Predicated region
      $region33: #{tpu_custom_call.1} parent=5 // pred_check
        _
      $region34: #{tpu_custom_call.1} parent=5 // pred_check_branch
        %233 = sbr.rel (%p230) target = $region36
      $region35: #{tpu_custom_call.1} parent=5 // pred_region
        %s234 = ssub.s32 %s17, 1
        %s235 = sand.u32 %s42, 1
        %s236 = scalar_lea.sflag [#allocation3], %s235
        %s237 = sand.u32 %s42, 1
        %s238 = smul.addr %s237, 8
        %s239 = scalar_lea.vmem [#allocation2], %s238
        // Predicated region
        $region37: #{tpu_custom_call.1} parent=35 // pred_check
          %p240 = pneg %p55
        $region38: #{tpu_custom_call.1} parent=35 // pred_check_branch
          %242 = sbr.rel (%p240) target = $region40
        $region39: #{tpu_custom_call.1} parent=35 // pred_region
          %244 = dma.done %s236, 128
        $region40: #{tpu_custom_call.1} parent=35 // pred_fallthru
          _
        // Predicated region
        $region41: #{tpu_custom_call.1} parent=35 // pred_check
          %p245 = pneg %p76
        $region42: #{tpu_custom_call.1} parent=35 // pred_check_branch
          %247 = sbr.rel (%p245) target = $region44
        $region43: #{tpu_custom_call.1} parent=35 // pred_region
          %249 = dma.done [#allocation6], 16
        $region44: #{tpu_custom_call.1} parent=35 // pred_fallthru
          _
        // Predicated region
        $region45: #{tpu_custom_call.1} parent=35 // pred_check
          %p250 = pneg %p102
        $region46: #{tpu_custom_call.1} parent=35 // pred_check_branch
          %252 = sbr.rel (%p250) target = $region48
        $region47: #{tpu_custom_call.1} parent=35 // pred_region
          %254 = dma.done [#allocation6], 256
        $region48: #{tpu_custom_call.1} parent=35 // pred_fallthru
          _
        %s255 = sand.u32 %s42, 1
        %s256 = scalar_lea.sflag [#allocation3], %s255
        %s257 = sand.u32 %s42, 1
        %s258 = smul.addr %s257, 8
        %s259 = scalar_lea.vmem [#allocation2], %s258
        %p260 = pneg %p55
        %p261 = pneg %p52
        %p262 = pneg %p76
        %p263 = pneg %p73
        %p264 = pneg %p102
        %p265 = pneg %p99
        %p266 = scmp.lt.s32.totalorder %s27, 0
        %s267 = scalar_select %p266, %s27, 0
        %s268 = scalar_lea.vmem %s3, %s267
        %p269 = pneg %p128
        %p270 = pneg %p125
        %p271 = pneg %p156
        %p272 = pneg %p153
        %s273 = sand.u32 %s143, 1
        %s274 = scalar_lea.sflag [#allocation4], %s273
        %s275 = sand.u32 %s143, 1
        %s276 = smul.addr %s275, 8
        %s277 = scalar_lea.vmem [#allocation8], %s276
        %p278 = scmp.lt.s32.totalorder %s27, 0
        %s279 = scalar_select %p278, %s27, 0
        %s280 = scalar_lea.vmem %s3, %s279
        %v282 = vld [vmem:[%s239] sm:$0xff]
        %v283 = vmul.f32 %v282, %v282
        %vm284 = vcmask 261120
        %v285 = vsel %vm284, %v283, 0.0
        %286 = vadd.xlane.f32.xlu0 %v285
        %v287 = vpop.xlane.xlu0 %286
        %v288 = vmax.f32 %v287, 1e-24
        %v289 = vrsqrt.pop %v288
        %v290 = vmul.f32 %v289, %v288
        %v291 = vmul.f32 %v290, %v289
        %v292 = vmul.f32 0.5, %v291
        %v293 = vsub.f32 1.5, %v292
        %v294 = vmul.f32 %v289, %v293
        %vm295 = vweird.f32 %v288
        %vm296 = vweird.f32 %v289
        %vm297 = vmor %vm295, %vm296
        %v298 = vsel %vm297, %v289, %v294
        %v299 = vmul.f32 %v282, %v298
        %v300 = vld [vmem:[#allocation5] sm:$0x1]
        %v302 = vperm.slane %v300, 0
        %v304 = vmul.f32 %v299, %v302
        %v305 = vpack.c.bf16 %v304, %v304
        %v306 = vld [vmem:[#allocation7] sm:$0xf]
        %v307 = vld [vmem:[#allocation7 + $0x4] sm:$0xf]
        %v308 = vld [vmem:[#allocation7 + $0x8] sm:$0xf]
        %v309 = vld [vmem:[#allocation7 + $0xc] sm:$0xf]
        %v310 = vld [vmem:[%s280] sm:$0x1]
        %v312 = vperm.slane %v310, 0
        %v318 = vunpack.c.l.b16 %v306
        %v319 = vunpack.c.l.b16 %v307
        %v320 = vunpack.c.l.b16 %v308
        %v321 = vunpack.c.l.b16 %v309
        %v322 = vpack.c.b16 %v319, %v318
        %v323 = vpack.c.b16 %v321, %v320
        %v327 = vsel %vm284, %v305, 0
        %329 = vmatpush.bf16.msra.mxu0 0
        %330 = vmatpush.bf16.msra.mxu0 0
        %331 = vmatpush.bf16.msra.mxu0 0
        %332 = vmatpush.bf16.msra.mxu0 0
        %333 = vmatpush.bf16.msra.mxu0 0
        %334 = vmatpush.bf16.msra.mxu0 0
        %335 = vmatpush.bf16.msra.mxu0 %v323
        %336 = vmatpush.bf16.msra.mxu0 %v322
        %337 = vmatmul.bf16.gmra.mxu0 %v327
        %v338 = vpop.f32.mrf.mxu0
        %v339 = vadd.f32 %v312, %v338
        %v340 = vpop.f32.mrf.mxu0
        %341 = vdwg.mxu0
        %vm342 = vcmask 523264
        %343 = vst.msk [vmem:[%s277] sm:$0xff] %vm342, %v339
        %s344 = sand.u32 %s143, 1
        %s345 = scalar_lea.sflag [#allocation4], %s344
        %s346 = sand.u32 %s143, 1
        %s347 = smul.addr %s346, 8
        %s348 = scalar_lea.vmem [#allocation8], %s347
        // Predicated region
        $region49: #{tpu_custom_call.1} parent=35 // pred_check
          %p349 = pneg %p153
        $region50: #{tpu_custom_call.1} parent=35 // pred_check_branch
          %351 = sbr.rel (%p349) target = $region52
        $region51: #{tpu_custom_call.1} parent=35 // pred_region
          %353 = vsyncadd %s345, 0
          %s354 = sadd.s32 %s27, %s26
          %s355 = smul.addr %s354, 8
          %s356 = scalar_lea.hbm %s4, %s355
          %s358 = sshll.u32 %s348, 4
          %s359 = int_to_ptr.vmem [resolvable:$true] %s358
          %s360 = sshll.u32 %s356, 4
          %s361 = int_to_ptr.hbm [resolvable:$true] %s360
          %363 = dma.vmem_to_hbm [thread:$0]  %s359, 128, %s361, %s345
        $region52: #{tpu_custom_call.1} parent=35 // pred_fallthru
          _
      $region36: #{tpu_custom_call.1} parent=5 // pred_fallthru
        _
      %p364 = scmp.le.s32.totalorder 2, %s17
      // Predicated region
      $region53: #{tpu_custom_call.1} parent=5 // pred_check
        %p365 = pneg %p364
      $region54: #{tpu_custom_call.1} parent=5 // pred_check_branch
        %367 = sbr.rel (%p365) target = $region56
      $region55: #{tpu_custom_call.1} parent=5 // pred_region
        %s368 = ssub.s32 %s17, 2
        // Predicated region
        $region57: #{tpu_custom_call.1} parent=55 // pred_check
          %p369 = pneg %p159
        $region58: #{tpu_custom_call.1} parent=55 // pred_check_branch
          %371 = sbr.rel (%p369) target = $region60
        $region59: #{tpu_custom_call.1} parent=55 // pred_region
          %s372 = sand.u32 %s144, 1
          %s373 = scalar_lea.sflag [#allocation4], %s372
          %s374 = sand.u32 %s144, 1
          %s375 = smul.addr %s374, 8
          %s376 = scalar_lea.vmem [#allocation8], %s375
          %378 = dma.done %s373, 128
        $region60: #{tpu_custom_call.1} parent=55 // pred_fallthru
          _
      $region56: #{tpu_custom_call.1} parent=5 // pred_fallthru
        _
    $region6: #{tpu_custom_call.1} parent=1 // loop_footer
      %s21 = sadd.s32 1, %s17
    $region7: #{tpu_custom_call.1} parent=1 // loop_footer_branch
      %16 = sbr.rel target = $region3
    $region8: #{tpu_custom_call.1} parent=1 // loop_exit
      _
    %379 = vsyncpa [#allocation3], 1
    %s380 = scalar_lea.sflag [#allocation3], 1
    %381 = vsyncpa %s380, 1
    %382 = vsyncpa [#allocation6], 1
    %383 = vsyncpa [#allocation4], 1
    %s384 = scalar_lea.sflag [#allocation4], 1
    %385 = vsyncpa %s384, 1

</llo_original>
